<compile_context>
chip_gen: v7x
topology: tpu7x:2x2x1
jax: 0.10.0
libtpu: 0.0.40
codegen_flags: <defaults>
</compile_context>

<pallas_src>
import functools
import math

import jax
import jax.numpy as jnp
from jax.experimental import pallas as pl
from jax.experimental.pallas import tpu as pltpu

_LANE = 128


def _round_up(v, m):
    return (v + m - 1) // m * m


def _vmem_capacity_bytes():
    # Generation-aware VMEM budget (v5e/v6e: 128 MiB, v7x: 64 MiB per TC).
    try:
        return int(pltpu.get_tpu_info().vmem_capacity_bytes)
    except Exception:
        return 64 << 20  # conservative fallback (v7x per-TC)


# -----------------------------------------------------------------------------
# Path A: small graphs -- whole-problem fused kernel, NO grid (a 1-point grid
# buys no pipelining but still pays per-step overhead).
# -----------------------------------------------------------------------------
def _gcn_fused_kernel(x_ref, adj_ref, w_ref, out_ref):
    # support = x @ w (MXU, f32 accumulation); w pre-padded lane-dense.
    support = jnp.dot(x_ref[...], w_ref[...], preferred_element_type=jnp.float32)
    # output = adj @ support.  Keep adj @ (x @ w) order: f_out <= f_in, so the
    # O(n^2) adjacency contraction multiplies the *smaller* feature dim.
    out = jnp.dot(adj_ref[...], support, preferred_element_type=jnp.float32)
    f_p = support.shape[1]
    # Single lane-dense (n, 3*f_p) output slab: full-width vst stores.
    out_ref[:, 0 * f_p:1 * f_p] = support.astype(out_ref.dtype)
    out_ref[:, 1 * f_p:2 * f_p] = out.astype(out_ref.dtype)
    out_ref[:, 2 * f_p:3 * f_p] = jnp.maximum(out, 0.0).astype(out_ref.dtype)


def _gcn_fused(x, adj, w_pad, f_out, vmem_cap):
    n = x.shape[0]
    f_p = w_pad.shape[1]
    fused_bytes = 4 * (x.size + adj.size + w_pad.size + n * 3 * f_p)
    # Explicit scoped-VMEM limit with headroom (v5e default is only 16 MiB).
    vmem_limit = int(min(vmem_cap - (4 << 20),
                         max(fused_bytes + (8 << 20), 32 << 20)))
    packed = pl.pallas_call(
        _gcn_fused_kernel,
        out_shape=jax.ShapeDtypeStruct((n, 3 * f_p), jnp.float32),
        in_specs=[
            pl.BlockSpec(memory_space=pltpu.MemorySpace.VMEM),
            pl.BlockSpec(memory_space=pltpu.MemorySpace.VMEM),
            pl.BlockSpec(memory_space=pltpu.MemorySpace.VMEM),
        ],
        out_specs=pl.BlockSpec(memory_space=pltpu.MemorySpace.VMEM),
        compiler_params=pltpu.CompilerParams(vmem_limit_bytes=vmem_limit),
    )(x, adj, w_pad)
    support = packed[:, 0 * f_p:0 * f_p + f_out]
    output = packed[:, 1 * f_p:1 * f_p + f_out]
    output2 = packed[:, 2 * f_p:2 * f_p + f_out]
    return support, output, output2


# -----------------------------------------------------------------------------
# Path B: large graphs -- adj (n, n) streamed from HBM.
#   pass 1: support = x @ w, row-tiled (lane-dense f_p=128 layout for pass 2)
#   pass 2: output = adj @ support, grid (rows, k); support either fully
#           VMEM-resident or streamed per k block; ReLU fused into last k step.
# -----------------------------------------------------------------------------
def _support_kernel(x_ref, w_ref, s_ref):
    s_ref[...] = jnp.dot(
        x_ref[...], w_ref[...], preferred_element_type=jnp.float32
    ).astype(s_ref.dtype)


def _adj_spmm_kernel(adj_ref, s_ref, out_ref, out2_ref, acc_ref, *,
                     n, tk, f_out, mask_tail, resident):
    k = pl.program_id(1)
    a = adj_ref[...]
    if mask_tail:
        # Ragged K tail: the last adj column block is partially out of bounds
        # (unspecified values); zero those columns.  Support rows >= n are
        # exact zeros (x was zero-padded), so masked entries contribute nothing.
        col = jax.lax.broadcasted_iota(jnp.int32, a.shape, 1) + k * tk
        a = jnp.where(col < n, a, 0).astype(a.dtype)
    if resident:
        # Whole support matrix is resident in VMEM; slice the k-th row block.
        s_blk = s_ref[pl.ds(pl.multiple_of(k * tk, 8), tk), :]
    else:
        s_blk = s_ref[...]
    part = jnp.dot(a, s_blk, preferred_element_type=jnp.float32)

    @pl.when(k == 0)
    def _():
        acc_ref[...] = part          # direct assign: no zero-fill + add

    @pl.when(k > 0)
    def _():
        acc_ref[...] += part

    @pl.when(k == pl.num_programs(1) - 1)
    def _():
        acc = acc_ref[:, :f_out]     # f_p-wide accumulator, f_out-wide writeback
        out_ref[...] = acc.astype(out_ref.dtype)
        out2_ref[...] = jnp.maximum(acc, 0.0).astype(out2_ref.dtype)


def _gcn_tiled(x, adj, w_pad, f_out, vmem_cap, *, adj_bf16=False, tm=None, tk=None):
    n, f_in = x.shape
    f_p = w_pad.shape[1]

    if tk is None:
        tk = 1024 if n >= 1024 else _round_up(min(n, 1024), _LANE)
    if tm is None:
        tm = 512 if n >= 1024 else min(256, _round_up(n, 8))

    # Pad only x (O(n*f_in), cheap) so support rows are a multiple of tk and the
    # padded support rows are exact zeros.  adj (the dominant n^2 HBM stream) is
    # NOT copied/padded.
    n_pk = _round_up(n, tk)
    x_pad = x if n_pk == n else jnp.zeros((n_pk, f_in), x.dtype).at[:n, :].set(x)

    # Pass 1: support = x @ w, row-tiled, lane-dense f_p output.
    tm1 = min(512, n_pk)
    support_pad = pl.pallas_call(
        _support_kernel,
        out_shape=jax.ShapeDtypeStruct((n_pk, f_p), jnp.float32),
        grid=(pl.cdiv(n_pk, tm1),),
        in_specs=[
            pl.BlockSpec((tm1, f_in), lambda i: (i, 0)),
            pl.BlockSpec((f_in, f_p), lambda i: (0, 0)),
        ],
        out_specs=pl.BlockSpec((tm1, f_p), lambda i: (i, 0)),
        compiler_params=pltpu.CompilerParams(dimension_semantics=("parallel",)),
    )(x_pad, w_pad)

    # Optional bf16 cast of the dominant adj stream (accumulation stays f32).
    if adj_bf16:
        adj_in = adj.astype(jnp.bfloat16)
        s_in = support_pad.astype(jnp.bfloat16)
    else:
        adj_in, s_in = adj, support_pad
    a_item = jnp.dtype(adj_in.dtype).itemsize
    s_item = jnp.dtype(s_in.dtype).itemsize

    # Decide support residency against this chip's VMEM (conservative x2 buffer
    # accounting; on v7x megacore each TC holds its own resident copy).
    resident_bytes = 2 * n_pk * f_p * s_item
    base_bytes = (2 * tm * tk * a_item      # adj tiles, double-buffered
                  + tm * f_p * 4            # accumulator scratch
                  + 4 * tm * f_out * 4      # two outputs, double-buffered
                  + (2 << 20))              # headroom
    budget = int(vmem_cap * 0.75)
    resident = base_bytes + resident_bytes <= budget
    if resident:
        s_spec = pl.BlockSpec((n_pk, f_p), lambda i, k: (0, 0))
        needed = base_bytes + resident_bytes
    else:
        s_spec = pl.BlockSpec((tk, f_p), lambda i, k: (k, 0))
        needed = base_bytes + 2 * tk * f_p * s_item
    vmem_limit = int(min(vmem_cap - (4 << 20), max(needed + (8 << 20), 32 << 20)))

    mask_tail = (n % tk) != 0
    n_pm = _round_up(n, tm)   # pad only the small (n, f_out) outputs, not adj
    grid = (n_pm // tm, n_pk // tk)

    kernel = functools.partial(
        _adj_spmm_kernel, n=n, tk=tk, f_out=f_out,
        mask_tail=mask_tail, resident=resident)

    output_pad, output2_pad = pl.pallas_call(
        kernel,
        out_shape=(
            jax.ShapeDtypeStruct((n_pm, f_out), jnp.float32),
            jax.ShapeDtypeStruct((n_pm, f_out), jnp.float32),
        ),
        grid=grid,
        in_specs=[
            pl.BlockSpec((tm, tk), lambda i, k: (i, k)),
            s_spec,
        ],
        out_specs=(
            pl.BlockSpec((tm, f_out), lambda i, k: (i, 0)),
            pl.BlockSpec((tm, f_out), lambda i, k: (i, 0)),
        ),
        scratch_shapes=[pltpu.VMEM((tm, f_p), jnp.float32)],
        compiler_params=pltpu.CompilerParams(
            # Row axis parallel (megacore), reduction axis arbitrary (last).
            dimension_semantics=("parallel", "arbitrary"),
            vmem_limit_bytes=vmem_limit,
        ),
    )(adj_in, s_in)

    return (
        support_pad[:n, :f_out],
        output_pad[:n, :],
        output2_pad[:n, :],
    )


def op_graph_convolution(x, adj, w, *, force_tiled=None, adj_bf16=False):
    """GCN forward matching OP_GraphConvolution (dropout p=0.0 => identity).

    Returns (input, support, output, output2).
    """
    n, f_in = x.shape
    f_out = w.shape[1]
    x32 = x.astype(jnp.float32)
    adj32 = adj.astype(jnp.float32)
    # Lane-dense padded weight: pad f_out up to 128 lanes with zeros so every
    # support store is a full-width vst; padded columns are exactly zero.
    f_p = _round_up(f_out, _LANE)
    w_pad = jnp.zeros((f_in, f_p), jnp.float32).at[:, :f_out].set(
        w.astype(jnp.float32)
    )

    vmem_cap = _vmem_capacity_bytes()
    # Rough VMEM footprint of the whole-array fused path (dominated by adj);
    # generation-aware routing threshold with headroom under the scoped limit.
    fused_bytes = 4 * (n * f_in + n * n + f_in * f_p + n * 3 * f_p)
    fused_limit = min(int(vmem_cap * 0.45), 40 << 20)
    use_tiled = force_tiled if force_tiled is not None else fused_bytes > fused_limit

    if use_tiled:
        support, output, output2 = _gcn_tiled(
            x32, adj32, w_pad, f_out, vmem_cap, adj_bf16=adj_bf16)
    else:
        support, output, output2 = _gcn_fused(x32, adj32, w_pad, f_out, vmem_cap)

    # dropout p=0.0 (and eval mode) => input passthrough, like the torch module.
    return x, support, output, output2


if __name__ == "__main__":
    key = jax.random.PRNGKey(0)

    def make_adj(k, n):
        a = (jax.random.uniform(k, (n, n)) > 0.6).astype(jnp.float32)
        a = jnp.maximum(a, a.T) + jnp.eye(n, dtype=jnp.float32)
        return a / jnp.sum(a, axis=1, keepdims=True)

    def xavier_uniform(k, fan_in, fan_out):
        bound = math.sqrt(6.0 / (fan_in + fan_out))
        return jax.random.uniform(
            k, (fan_in, fan_out), minval=-bound, maxval=bound, dtype=jnp.float32
        )

    def check(x, adj, w, force_tiled):
        inp, support, output, output2 = op_graph_convolution(
            x, adj, w, force_tiled=force_tiled
        )
        jax.block_until_ready((inp, support, output, output2))
        hi = jax.lax.Precision.HIGHEST
        support_ref = jnp.matmul(x, w, precision=hi)
        output_ref = jnp.matmul(adj, support_ref, precision=hi)
        output2_ref = jnp.maximum(output_ref, 0.0)
        assert jnp.array_equal(inp, x)
        assert jnp.allclose(support, support_ref, atol=1e-3, rtol=1e-3)
        assert jnp.allclose(output, output_ref, atol=1e-3, rtol=1e-3)
        assert jnp.allclose(output2, output2_ref, atol=1e-3, rtol=1e-3)

    keys = jax.random.split(key, 9)

    # Small graph (module-scale shapes) -> fused whole-array path (auto-routed).
    n, f_in, f_out = 8, 32, 16
    x_s = jax.random.normal(keys[0], (n, f_in), dtype=jnp.float32)
    adj_s = make_adj(keys[1], n)
    w_s = xavier_uniform(keys[2], f_in, f_out)
    check(x_s, adj_s, w_s, force_tiled=None)

    # Larger graph, tile-divisible -> tiled adj-streaming path (resident support).
    n, f_in, f_out = 512, 64, 16
    x_l = jax.random.normal(keys[3], (n, f_in), dtype=jnp.float32)
    adj_l = make_adj(keys[4], n)
    w_l = xavier_uniform(keys[5], f_in, f_out)
    check(x_l, adj_l, w_l, force_tiled=True)

    # Ragged graph (n not tile-divisible) -> exercises in-kernel K-tail masking
    # with NO padded-adj HBM copy.
    n, f_in, f_out = 300, 48, 16
    x_r = jax.random.normal(keys[6], (n, f_in), dtype=jnp.float32)
    adj_r = make_adj(keys[7], n)
    w_r = xavier_uniform(keys[8], f_in, f_out)
    check(x_r, adj_r, w_r, force_tiled=True)

    print("KERNEL_OK")
</pallas_src>

<mosaic_0001>
module attributes {stable_mosaic.version = 11 : i64} {
  func.func @_gcn_fused_kernel(%arg0: memref<8x32xf32, #tpu.memory_space<vmem>>, %arg1: memref<8x8xf32, #tpu.memory_space<vmem>>, %arg2: memref<32x128xf32, #tpu.memory_space<vmem>>, %arg3: memref<8x384xf32, #tpu.memory_space<vmem>>) attributes {dimension_semantics = [], scalar_prefetch = 0 : i64, scratch_operands = 0 : i64, tpu.core_type = #tpu.core_type<tc>} {
    %c0 = arith.constant 0 : index
    %c0_0 = arith.constant 0 : index
    %0 = vector.load %arg0[%c0, %c0_0] : memref<8x32xf32, #tpu.memory_space<vmem>>, vector<8x32xf32>
    %c0_1 = arith.constant 0 : index
    %c0_2 = arith.constant 0 : index
    %1 = vector.load %arg2[%c0_1, %c0_2] : memref<32x128xf32, #tpu.memory_space<vmem>>, vector<32x128xf32>
    %cst = arith.constant dense<0.000000e+00> : vector<8x128xf32>
    %2 = tpu.matmul %0, %1, %cst {dimension_numbers = #tpu.dot_dimension_numbers<[1], [0], [0], [1], [0, 0, 1, 1], [], []>} : vector<8x32xf32>, vector<32x128xf32>, vector<8x128xf32> -> vector<8x128xf32>
    %c0_3 = arith.constant 0 : index
    %c0_4 = arith.constant 0 : index
    %3 = vector.load %arg1[%c0_3, %c0_4] : memref<8x8xf32, #tpu.memory_space<vmem>>, vector<8x8xf32>
    %cst_5 = arith.constant dense<0.000000e+00> : vector<8x128xf32>
    %4 = tpu.matmul %3, %2, %cst_5 {dimension_numbers = #tpu.dot_dimension_numbers<[1], [0], [0], [1], [0, 0, 1, 1], [], []>} : vector<8x8xf32>, vector<8x128xf32>, vector<8x128xf32> -> vector<8x128xf32>
    %c0_6 = arith.constant 0 : index
    %c0_7 = arith.constant 0 : index
    %5 = vector.load %arg3[%c0_6, %c0_7] : memref<8x384xf32, #tpu.memory_space<vmem>>, vector<8x128xf32>
    tpu.vector_store %arg3[%c0_6, %c0_7], %2 {strides = array<i32>} : memref<8x384xf32, #tpu.memory_space<vmem>>, vector<8x128xf32>,
    %c0_8 = arith.constant 0 : index
    %c128 = arith.constant 128 : index
    %6 = vector.load %arg3[%c0_8, %c128] : memref<8x384xf32, #tpu.memory_space<vmem>>, vector<8x128xf32>
    tpu.vector_store %arg3[%c0_8, %c128], %4 {strides = array<i32>} : memref<8x384xf32, #tpu.memory_space<vmem>>, vector<8x128xf32>,
    %cst_9 = arith.constant 0.000000e+00 : f32
    %7 = vector.broadcast %cst_9 : f32 to vector<8x128xf32>
    %8 = arith.maximumf %4, %7 : vector<8x128xf32>
    %c0_10 = arith.constant 0 : index
    %c256 = arith.constant 256 : index
    %9 = vector.load %arg3[%c0_10, %c256] : memref<8x384xf32, #tpu.memory_space<vmem>>, vector<8x128xf32>
    tpu.vector_store %arg3[%c0_10, %c256], %8 {strides = array<i32>} : memref<8x384xf32, #tpu.memory_space<vmem>>, vector<8x128xf32>,
    return
  }
}

</mosaic_0001>

<llo_original>
// kernel: tpu_custom_call.1
$region0: #{tpu_custom_call.1}
  #allocation0 [shape = 'u32[]', space=smem, size = 0x4, offset = 0x4, fixed_abs, tag = 'smem constant byte address 0x4 - core index']
  #allocation1 [shape = 'u32[144,128]{1,0:T(1,128)}', space=vmem, size = 0x12000, scoped, tag = 'internal scratch']
  %s0 = inlined_call_operand.hbm [shape: f32[8,32], index: 0, kind: input, shape index: {}]
  %s1 = inlined_call_operand.hbm [shape: f32[8,8], index: 1, kind: input, shape index: {}]
  %s2 = inlined_call_operand.hbm [shape: f32[32,128], index: 2, kind: input, shape index: {}]
  %s3 = inlined_call_operand.hbm [shape: f32[8,384], index: 3, kind: output, shape index: {}]
  %s4 = sld [smem:[#allocation0]]
  $region34: #{tpu_custom_call.1} parent=0
    _
  %s6 = ssub.s32 1, %s4
  %s7 = scalar_select 0, %s6, %s4
  $region1: #{tpu_custom_call.1} parent=0
    #allocation2 [shape = 'u8[4096]{0}', space=vmem, size = 0x1000, scoped, tag = 'input window, operand 0, single buffered']
    #allocation3 [shape = 's32[1]{0}', space=sflag, size = 0x4, scoped, tag = 'scoped memory for tpu_custom_call.1']
    #allocation4 [shape = 's32[1]{0}', space=sflag, size = 0x4, scoped, tag = 'scoped memory for tpu_custom_call.1']
    #allocation5 [shape = 'u8[4096]{0}', space=vmem, size = 0x1000, scoped, tag = 'input window, operand 1, single buffered']
    #allocation6 [shape = 's32[1]{0}', space=sflag, size = 0x4, scoped, tag = 'scoped memory for tpu_custom_call.1']
    #allocation7 [shape = 'u8[16384]{0}', space=vmem, size = 0x4000, scoped, tag = 'input window, operand 2, single buffered']
    #allocation8 [shape = 'u8[12288]{0}', space=vmem, size = 0x3000, scoped, tag = 'output window, operand 0, single buffered']
    %8 = vsyncpa [#allocation3], 0
    %9 = vsyncpa [#allocation6], 0
    %10 = vsyncpa [#allocation4], 0
    // Predicated region
    $region2: #{tpu_custom_call.1} parent=1 // pred_check
      _
    $region3: #{tpu_custom_call.1} parent=1 // pred_check_branch
      %12 = sbr.rel (0) target = $region5
    $region4: #{tpu_custom_call.1} parent=1 // pred_region
      %s14 = ssub.s32 128, 128
      %15 = vsyncadd [#allocation3], %s14
      %s17 = sshll.u32 [#allocation2], 4
      %s18 = int_to_ptr.vmem [resolvable:$true] %s17
      %20 = dma.hbm_to_vmem [thread:$0]  %s0, 128, %s18, [#allocation3]
    $region5: #{tpu_custom_call.1} parent=1 // pred_fallthru
      _
    // Predicated region
    $region6: #{tpu_custom_call.1} parent=1 // pred_check
      _
    $region7: #{tpu_custom_call.1} parent=1 // pred_check_branch
      %22 = sbr.rel (0) target = $region9
    $region8: #{tpu_custom_call.1} parent=1 // pred_region
      %s24 = ssub.s32 128, 128
      %25 = vsyncadd [#allocation6], %s24
      %s27 = sshll.u32 [#allocation5], 4
      %s28 = int_to_ptr.vmem [resolvable:$true] %s27
      %30 = dma.hbm_to_vmem [thread:$0]  %s1, 128, %s28, [#allocation6]
    $region9: #{tpu_custom_call.1} parent=1 // pred_fallthru
      _
    // Predicated region
    $region10: #{tpu_custom_call.1} parent=1 // pred_check
      _
    $region11: #{tpu_custom_call.1} parent=1 // pred_check_branch
      %32 = sbr.rel (0) target = $region13
    $region12: #{tpu_custom_call.1} parent=1 // pred_region
      %s34 = ssub.s32 512, 512
      %35 = vsyncadd [#allocation6], %s34
      %s36 = sshll.u32 [#allocation7], 4
      %s37 = int_to_ptr.vmem [resolvable:$true] %s36
      %42 = dma.hbm_to_vmem [thread:$0]  %s2, 512, %s37, [#allocation6], 128, 128, 8
    $region13: #{tpu_custom_call.1} parent=1 // pred_fallthru
      _
    // Predicated region
    $region14: #{tpu_custom_call.1} parent=1 // pred_check
      _
    $region15: #{tpu_custom_call.1} parent=1 // pred_check_branch
      %44 = sbr.rel (0) target = $region17
    $region16: #{tpu_custom_call.1} parent=1 // pred_region
      %45 = dma.done [#allocation3], 128
    $region17: #{tpu_custom_call.1} parent=1 // pred_fallthru
      _
    // Predicated region
    $region18: #{tpu_custom_call.1} parent=1 // pred_check
      _
    $region19: #{tpu_custom_call.1} parent=1 // pred_check_branch
      %47 = sbr.rel (0) target = $region21
    $region20: #{tpu_custom_call.1} parent=1 // pred_region
      %48 = dma.done [#allocation6], 128
    $region21: #{tpu_custom_call.1} parent=1 // pred_fallthru
      _
    // Predicated region
    $region22: #{tpu_custom_call.1} parent=1 // pred_check
      _
    $region23: #{tpu_custom_call.1} parent=1 // pred_check_branch
      %50 = sbr.rel (0) target = $region25
    $region24: #{tpu_custom_call.1} parent=1 // pred_region
      %51 = dma.done [#allocation6], 512
    $region25: #{tpu_custom_call.1} parent=1 // pred_fallthru
      _
    %v52 = vld [vmem:[#allocation2] sm:$0xff]
    %v53 = vld [vmem:[#allocation7] sm:$0xff]
    %v54 = vld [vmem:[#allocation7 + $0x8] sm:$0xff]
    %v55 = vld [vmem:[#allocation7 + $0x10] sm:$0xff]
    %v56 = vld [vmem:[#allocation7 + $0x18] sm:$0xff]
    %vm57 = vcmask 261120
    %v59 = vsel %vm57, %v52, 0
    %61 = vmatprep.subr.mxu0 0.0
    %62 = vmatpush1.msra.mxu0 %v53
    %63 = vmatprep.subr.mxu0 0.0
    %64 = vmatpush1.msra.mxu0 %v54
    %65 = vmatprep.subr.mxu0 0.0
    %66 = vmatpush1.msra.mxu0 %v55
    %67 = vmatprep.subr.mxu0 0.0
    %68 = vmatpush1.msra.mxu0 %v56
    %69 = vmatprep.subr.mxu0 0.0
    %70 = vmatpush1.msra.mxu0 0.0
    %71 = vmatprep.subr.mxu0 0.0
    %72 = vmatpush1.msra.mxu0 0.0
    %73 = vmatprep.subr.mxu0 0.0
    %74 = vmatpush1.msra.mxu0 0.0
    %75 = vmatprep.subr.mxu0 0.0
    %76 = vmatpush1.msra.mxu0 0.0
    %77 = vmatprep.subr.mxu0 0.0
    %78 = vmatpush1.msra.mxu0 0.0
    %79 = vmatprep.subr.mxu0 0.0
    %80 = vmatpush1.msra.mxu0 0.0
    %81 = vmatprep.subr.mxu0 0.0
    %82 = vmatpush1.msra.mxu0 0.0
    %83 = vmatprep.subr.mxu0 0.0
    %84 = vmatpush1.msra.mxu0 0.0
    %85 = vmatprep.subr.mxu0 0.0
    %86 = vmatpush1.msra.mxu0 0.0
    %87 = vmatprep.subr.mxu0 0.0
    %88 = vmatpush1.msra.mxu0 0.0
    %89 = vmatprep.subr.mxu0 0.0
    %90 = vmatpush1.msra.mxu0 0.0
    %91 = vmatprep.subr.mxu0 0.0
    %92 = vmatpush1.msra.mxu0 0.0
    %93 = vmatprep.subr.mxu0 0.0
    %94 = vmatpush1.msra.mxu0 0.0
    %95 = vmatprep.subr.mxu0 0.0
    %96 = vmatpush1.msra.mxu0 0.0
    %97 = vmatprep.subr.mxu0 0.0
    %98 = vmatpush1.msra.mxu0 0.0
    %99 = vmatprep.subr.mxu0 0.0
    %100 = vmatpush1.msra.mxu0 0.0
    %101 = vmatprep.subr.mxu0 0.0
    %102 = vmatpush1.msra.mxu0 0.0
    %103 = vmatprep.subr.mxu0 0.0
    %104 = vmatpush1.msra.mxu0 0.0
    %105 = vmatprep.subr.mxu0 0.0
    %106 = vmatpush1.msra.mxu0 0.0
    %107 = vmatprep.subr.mxu0 0.0
    %108 = vmatpush1.msra.mxu0 0.0
    %109 = vmatprep.subr.mxu0 0.0
    %110 = vmatpush1.msra.mxu0 0.0
    %111 = vmatprep.subr.mxu0 0.0
    %112 = vmatpush1.msra.mxu0 0.0
    %113 = vmatprep.subr.mxu0 0.0
    %114 = vmatpush1.msra.mxu0 0.0
    %115 = vmatprep.subr.mxu0 0.0
    %116 = vmatpush1.msra.mxu0 0.0
    %117 = vmatprep.subr.mxu0 0.0
    %118 = vmatpush1.msra.mxu0 0.0
    %119 = vmatprep.subr.mxu0 0.0
    %120 = vmatpush1.msra.mxu0 0.0
    %121 = vmatprep.subr.mxu0 0.0
    %122 = vmatpush1.msra.mxu0 0.0
    %123 = vmatprep.subr.mxu0 0.0
    %124 = vmatpush1.msra.mxu0 0.0
    %125 = vmatprep.mubr.f32.mxu0 0.0
    %126 = vmatmul.mubr.f32.gmra.mrb[0].mxu0 %v59
    %v127 = vpop.f32.mrb[0].mxu0
    %v128 = vadd.f32 0.0, %v127
    %v129 = vpop.f32.mrb[0].mxu0
    %130 = vdwg.mxu0
    %v131 = vld [vmem:[#allocation5] sm:$0xff]
    %vm132 = vcmask 64512
    %v134 = vsel %vm132, %v131, 0
    %136 = vmatprep.subr.mxu0 0.0
    %137 = vmatpush1.msra.mxu0 %v128
    %138 = vmatprep.subr.mxu0 0.0
    %139 = vmatpush1.msra.mxu0 0.0
    %140 = vmatprep.subr.mxu0 0.0
    %141 = vmatpush1.msra.mxu0 0.0
    %142 = vmatprep.subr.mxu0 0.0
    %143 = vmatpush1.msra.mxu0 0.0
    %144 = vmatprep.subr.mxu0 0.0
    %145 = vmatpush1.msra.mxu0 0.0
    %146 = vmatprep.subr.mxu0 0.0
    %147 = vmatpush1.msra.mxu0 0.0
    %148 = vmatprep.subr.mxu0 0.0
    %149 = vmatpush1.msra.mxu0 0.0
    %150 = vmatprep.subr.mxu0 0.0
    %151 = vmatpush1.msra.mxu0 0.0
    %152 = vmatprep.subr.mxu0 0.0
    %153 = vmatpush1.msra.mxu0 0.0
    %154 = vmatprep.subr.mxu0 0.0
    %155 = vmatpush1.msra.mxu0 0.0
    %156 = vmatprep.subr.mxu0 0.0
    %157 = vmatpush1.msra.mxu0 0.0
    %158 = vmatprep.subr.mxu0 0.0
    %159 = vmatpush1.msra.mxu0 0.0
    %160 = vmatprep.subr.mxu0 0.0
    %161 = vmatpush1.msra.mxu0 0.0
    %162 = vmatprep.subr.mxu0 0.0
    %163 = vmatpush1.msra.mxu0 0.0
    %164 = vmatprep.subr.mxu0 0.0
    %165 = vmatpush1.msra.mxu0 0.0
    %166 = vmatprep.subr.mxu0 0.0
    %167 = vmatpush1.msra.mxu0 0.0
    %168 = vmatprep.subr.mxu0 0.0
    %169 = vmatpush1.msra.mxu0 0.0
    %170 = vmatprep.subr.mxu0 0.0
    %171 = vmatpush1.msra.mxu0 0.0
    %172 = vmatprep.subr.mxu0 0.0
    %173 = vmatpush1.msra.mxu0 0.0
    %174 = vmatprep.subr.mxu0 0.0
    %175 = vmatpush1.msra.mxu0 0.0
    %176 = vmatprep.subr.mxu0 0.0
    %177 = vmatpush1.msra.mxu0 0.0
    %178 = vmatprep.subr.mxu0 0.0
    %179 = vmatpush1.msra.mxu0 0.0
    %180 = vmatprep.subr.mxu0 0.0
    %181 = vmatpush1.msra.mxu0 0.0
    %182 = vmatprep.subr.mxu0 0.0
    %183 = vmatpush1.msra.mxu0 0.0
    %184 = vmatprep.subr.mxu0 0.0
    %185 = vmatpush1.msra.mxu0 0.0
    %186 = vmatprep.subr.mxu0 0.0
    %187 = vmatpush1.msra.mxu0 0.0
    %188 = vmatprep.subr.mxu0 0.0
    %189 = vmatpush1.msra.mxu0 0.0
    %190 = vmatprep.subr.mxu0 0.0
    %191 = vmatpush1.msra.mxu0 0.0
    %192 = vmatprep.subr.mxu0 0.0
    %193 = vmatpush1.msra.mxu0 0.0
    %194 = vmatprep.subr.mxu0 0.0
    %195 = vmatpush1.msra.mxu0 0.0
    %196 = vmatprep.subr.mxu0 0.0
    %197 = vmatpush1.msra.mxu0 0.0
    %198 = vmatprep.subr.mxu0 0.0
    %199 = vmatpush1.msra.mxu0 0.0
    %200 = vmatprep.mubr.f32.mxu0 0.0
    %201 = vmatmul.mubr.f32.gmra.mrb[0].mxu0 %v134
    %v202 = vpop.f32.mrb[0].mxu0
    %v203 = vadd.f32 0.0, %v202
    %v204 = vpop.f32.mrb[0].mxu0
    %205 = vdwg.mxu0
    %206 = vst [vmem:[#allocation8] sm:$0xff] %v128
    %207 = vst [vmem:[#allocation8 + $0x8] sm:$0xff] %v203
    %v208 = vmax.f32 %v203, 0.0
    %209 = vst [vmem:[#allocation8 + $0x10] sm:$0xff] %v208
    // Predicated region
    $region26: #{tpu_custom_call.1} parent=1 // pred_check
      _
    $region27: #{tpu_custom_call.1} parent=1 // pred_check_branch
      %211 = sbr.rel (0) target = $region29
    $region28: #{tpu_custom_call.1} parent=1 // pred_region
      %s213 = ssub.s32 384, 384
      %214 = vsyncadd [#allocation4], %s213
      %s216 = sshll.u32 [#allocation8], 4
      %s217 = int_to_ptr.vmem [resolvable:$true] %s216
      %219 = dma.vmem_to_hbm [thread:$0]  %s217, 384, %s3, [#allocation4]
    $region29: #{tpu_custom_call.1} parent=1 // pred_fallthru
      _
    // Predicated region
    $region30: #{tpu_custom_call.1} parent=1 // pred_check
      _
    $region31: #{tpu_custom_call.1} parent=1 // pred_check_branch
      %221 = sbr.rel (0) target = $region33
    $region32: #{tpu_custom_call.1} parent=1 // pred_region
      %222 = dma.done [#allocation4], 384
    $region33: #{tpu_custom_call.1} parent=1 // pred_fallthru
      _
    %223 = vsyncpa [#allocation3], 1
    %224 = vsyncpa [#allocation6], 1
    %225 = vsyncpa [#allocation4], 1

</llo_original>
